<compile_context>
chip_gen: v6e
topology: v6e:2x2x1
jax: 0.10.0
libtpu: 0.0.40
codegen_flags: <defaults>
</compile_context>

<pallas_src>
import jax
import jax.numpy as jnp
import numpy as np
from jax.experimental import pallas as pl
from jax.experimental.pallas import tpu as pltpu


# ---------------------------------------------------------------------------
# Kernel: one row-tile, two MXU dots, two lane-dense-as-possible stores.
# ---------------------------------------------------------------------------
def _lambda_level_kernel(
    x0_ref, x1_ref,        # [TN, H*D] activation row tiles
    w0_ref, w1_ref,        # [H*D, H*L] block-diagonal rotated weights
    b0_ref, b1_ref,        # [1, H*L] bias rows
    y0_ref, y1_ref,        # [TN, H*L] outputs
):
    y0 = jnp.dot(x0_ref[...], w0_ref[...], preferred_element_type=jnp.float32)
    y1 = jnp.dot(x1_ref[...], w1_ref[...], preferred_element_type=jnp.float32)
    y0_ref[...] = (y0 + b0_ref[...]).astype(y0_ref.dtype)
    y1_ref[...] = (y1 + b1_ref[...]).astype(y1_ref.dtype)


# ---------------------------------------------------------------------------
# Wrapper-side precomputation (all tiny, O(D*L)).
# ---------------------------------------------------------------------------
def _round_up(x: int, m: int) -> int:
    return (x + m - 1) // m * m


def _effective_weight(w, num_levels: int, dim: int):
    """Rotated Linear weight: W_eff[:, l] = R_l^T w  (torchtune interleaved RoPE).

    w: [1, D].  Returns [D, L] float32, rows interleaved exactly like x:
      W_eff[2i,   l] = w[2i]   * cos(l*theta_i) + w[2i+1] * sin(l*theta_i)
      W_eff[2i+1, l] = w[2i+1] * cos(l*theta_i) - w[2i]   * sin(l*theta_i)
    """
    theta = 1.0 / (10000.0 ** (jnp.arange(0, dim, 2, dtype=jnp.float32) / dim))  # [Dh]
    pos = jnp.arange(num_levels, dtype=jnp.float32)                              # [L]
    ang = theta[:, None] * pos[None, :]                                          # [Dh, L]
    cos, sin = jnp.cos(ang), jnp.sin(ang)
    we = w[0, 0::2].astype(jnp.float32)[:, None]   # [Dh, 1]
    wo = w[0, 1::2].astype(jnp.float32)[:, None]
    eff_e = we * cos + wo * sin                    # [Dh, L]
    eff_o = wo * cos - we * sin                    # [Dh, L]
    return jnp.stack([eff_e, eff_o], axis=1).reshape(dim, num_levels)            # [D, L]


def lambda_level_mlp_forward(x0, x1, num_levels, params, *, tile_rows=2048):
    B, S, H, D = x0.shape
    assert x1.shape == (B, S, H, D)
    assert D % 2 == 0
    assert num_levels <= params["max_num_levels"]
    L = num_levels
    N = B * S
    HD = H * D
    HL = H * L

    # --- tiny per-level effective weights, block-diagonal over heads ---------
    w0_eff = _effective_weight(params["w0"], L, D)                    # [D, L]
    w1_eff = _effective_weight(params["w1"], L, D)                    # [D, L]
    eye_h = jnp.eye(H, dtype=jnp.float32)
    w0_blk = jnp.kron(eye_h, w0_eff)                                  # [H*D, H*L]
    w1_blk = jnp.kron(eye_h, w1_eff)                                  # [H*D, H*L]
    # Native bf16 MXU path when activations are bf16 (accumulation stays f32).
    w_dtype = jnp.bfloat16 if x0.dtype == jnp.bfloat16 else jnp.float32
    w0_blk = w0_blk.astype(w_dtype)
    w1_blk = w1_blk.astype(w_dtype)
    b0 = jnp.broadcast_to(params["b0"].astype(jnp.float32), (HL,)).reshape(1, HL)
    b1 = jnp.broadcast_to(params["b1"].astype(jnp.float32), (HL,)).reshape(1, HL)

    # --- activations: free contiguous reshape, native dtype, NO padding ------
    x0f = x0.reshape(N, HD)
    x1f = x1.reshape(N, HD)

    # --- row tiling -----------------------------------------------------------
    # Large tiles amortize the ~0.35us per-grid-step overhead; capping tn so the
    # grid has >= ~8 steps lets v7x shard the "parallel" axis across both TCs
    # even for moderate N (no-op on single-TC v5e/v6e).
    target_steps = 8
    tn = max(8, _round_up(-(-N // target_steps), 8))
    tn = min(int(tile_rows), tn)
    grid = (pl.cdiv(N, tn),)
    # The last tile may be ragged: Pallas masks the out-of-range output rows;
    # the corresponding input rows are garbage but rows are independent.

    x_spec = pl.BlockSpec((tn, HD), lambda i: (i, 0))
    w_spec = pl.BlockSpec((HD, HL), lambda i: (0, 0))
    b_spec = pl.BlockSpec((1, HL), lambda i: (0, 0))
    y_spec = pl.BlockSpec((tn, HL), lambda i: (i, 0))

    itemsize = x0.dtype.itemsize
    cost = pl.CostEstimate(
        flops=int(2 * N * HD * HL * 2),
        transcendentals=0,
        bytes_accessed=int(N * (2 * HD + 2 * HL) * itemsize),
    )

    y0, y1 = pl.pallas_call(
        _lambda_level_kernel,
        out_shape=(jax.ShapeDtypeStruct((N, HL), x0.dtype),
                   jax.ShapeDtypeStruct((N, HL), x0.dtype)),
        grid_spec=pltpu.PrefetchScalarGridSpec(
            num_scalar_prefetch=0,
            grid=grid,
            in_specs=[x_spec, x_spec, w_spec, w_spec, b_spec, b_spec],
            out_specs=[y_spec, y_spec],
        ),
        compiler_params=pltpu.CompilerParams(
            dimension_semantics=("parallel",),
            vmem_limit_bytes=32 * 1024 * 1024,
        ),
        cost_estimate=cost,
    )(x0f, x1f, w0_blk, w1_blk, b0, b1)

    # Free contiguous reshapes (no slicing pass over the output).
    return y0.reshape(B, S, H, L), y1.reshape(B, S, H, L)


# ---------------------------------------------------------------------------
# Pure-JAX mirror of the PyTorch loop (rope -> Linear -> concat), exact f32
# (multiply + sum, no matmul op) for checking.
# ---------------------------------------------------------------------------
def reference_forward(x0, x1, num_levels, params):
    B, S, H, D = x0.shape
    w0 = params["w0"].astype(jnp.float32)
    b0 = params["b0"].astype(jnp.float32)
    w1 = params["w1"].astype(jnp.float32)
    b1 = params["b1"].astype(jnp.float32)
    theta = 1.0 / (10000.0 ** (jnp.arange(0, D, 2, dtype=jnp.float32) / D))

    def rope(x, level):
        ang = float(level) * theta
        c, s = jnp.cos(ang), jnp.sin(ang)
        xe = x[..., 0::2].astype(jnp.float32)
        xo = x[..., 1::2].astype(jnp.float32)
        oe = xe * c - xo * s
        oo = xo * c + xe * s
        return jnp.stack([oe, oo], axis=-1).reshape(x.shape[:-1] + (D,))

    y0s, y1s = [], []
    for lvl in range(num_levels):
        y0s.append(jnp.sum(rope(x0, lvl) * w0[0], axis=-1, keepdims=True) + b0)
        y1s.append(jnp.sum(rope(x1, lvl) * w1[0], axis=-1, keepdims=True) + b1)
    return jnp.concatenate(y0s, axis=-1), jnp.concatenate(y1s, axis=-1)


if __name__ == "__main__":
    dim = 32
    max_num_levels = 8
    num_levels = 5

    key = jax.random.PRNGKey(0)
    k_x0, k_x1, k_w0, k_b0, k_w1, k_b1 = jax.random.split(key, 6)

    # torch.nn.Linear(dim, 1) init: U(-1/sqrt(dim), 1/sqrt(dim))
    bound = 1.0 / np.sqrt(dim)
    params = {
        "w0": jax.random.uniform(k_w0, (1, dim), jnp.float32, -bound, bound),
        "b0": jax.random.uniform(k_b0, (1,), jnp.float32, -bound, bound),
        "w1": jax.random.uniform(k_w1, (1, dim), jnp.float32, -bound, bound),
        "b1": jax.random.uniform(k_b1, (1,), jnp.float32, -bound, bound),
        "max_num_levels": max_num_levels,
    }

    # Case 1: rows divide the tile evenly; case 2: ragged last row-tile
    # (exercises the maskless-pad-free edge-block path).
    for (B, S, H) in [(2, 8, 4), (2, 9, 4)]:
        x0 = jax.random.normal(k_x0, (B, S, H, dim), dtype=jnp.float32)
        x1 = jax.random.normal(k_x1, (B, S, H, dim), dtype=jnp.float32)

        y0, y1 = lambda_level_mlp_forward(x0, x1, num_levels, params)
        jax.block_until_ready((y0, y1))

        r0, r1 = reference_forward(x0, x1, num_levels, params)
        assert y0.shape == (B, S, H, num_levels)
        assert y1.shape == (B, S, H, num_levels)
        # Tolerance accommodates the bf16-pass decomposition the MXU may use
        # for f32 matmuls; any structural bug (RoPE fold, block-diag layout,
        # bias, edge masking) would produce O(0.1-1) errors.
        np.testing.assert_allclose(np.asarray(y0), np.asarray(r0), rtol=1e-2, atol=1e-2)
        np.testing.assert_allclose(np.asarray(y1), np.asarray(r1), rtol=1e-2, atol=1e-2)

    print("KERNEL_OK")
</pallas_src>

<mosaic_0001>
module attributes {stable_mosaic.version = 11 : i64} {
  func.func @_lambda_level_kernel(%arg0: i32, %arg1: memref<8x128xf32, #tpu.memory_space<vmem>>, %arg2: memref<8x128xf32, #tpu.memory_space<vmem>>, %arg3: memref<128x20xf32, #tpu.memory_space<vmem>>, %arg4: memref<128x20xf32, #tpu.memory_space<vmem>>, %arg5: memref<1x20xf32, #tpu.memory_space<vmem>>, %arg6: memref<1x20xf32, #tpu.memory_space<vmem>>, %arg7: memref<8x20xf32, #tpu.memory_space<vmem>>, %arg8: memref<8x20xf32, #tpu.memory_space<vmem>>) attributes {dimension_semantics = [#tpu.dimension_semantics<parallel>], iteration_bounds = array<i64: 2>, scalar_prefetch = 0 : i64, scratch_operands = 0 : i64, tpu.core_type = #tpu.core_type<tc>, window_params = [{transform_indices = @transform_0, window_bounds = array<i64: 8, 128>}, {transform_indices = @transform_1, window_bounds = array<i64: 8, 128>}, {pipeline_mode = #tpu.pipeline_mode<synchronous>, transform_indices = @transform_2, window_bounds = array<i64: 128, 20>}, {pipeline_mode = #tpu.pipeline_mode<synchronous>, transform_indices = @transform_3, window_bounds = array<i64: 128, 20>}, {pipeline_mode = #tpu.pipeline_mode<synchronous>, transform_indices = @transform_4, window_bounds = array<i64: 1, 20>}, {pipeline_mode = #tpu.pipeline_mode<synchronous>, transform_indices = @transform_5, window_bounds = array<i64: 1, 20>}, {transform_indices = @transform_6, window_bounds = array<i64: 8, 20>}, {transform_indices = @transform_7, window_bounds = array<i64: 8, 20>}]} {
    %c0 = arith.constant 0 : index
    %c0_0 = arith.constant 0 : index
    %0 = vector.load %arg1[%c0, %c0_0] : memref<8x128xf32, #tpu.memory_space<vmem>>, vector<8x128xf32>
    %c0_1 = arith.constant 0 : index
    %c0_2 = arith.constant 0 : index
    %1 = vector.load %arg3[%c0_1, %c0_2] : memref<128x20xf32, #tpu.memory_space<vmem>>, vector<128x20xf32>
    %cst = arith.constant dense<0.000000e+00> : vector<8x20xf32>
    %2 = tpu.matmul %0, %1, %cst {dimension_numbers = #tpu.dot_dimension_numbers<[1], [0], [0], [1], [0, 0, 1, 1], [], []>} : vector<8x128xf32>, vector<128x20xf32>, vector<8x20xf32> -> vector<8x20xf32>
    %c0_3 = arith.constant 0 : index
    %c0_4 = arith.constant 0 : index
    %3 = vector.load %arg2[%c0_3, %c0_4] : memref<8x128xf32, #tpu.memory_space<vmem>>, vector<8x128xf32>
    %c0_5 = arith.constant 0 : index
    %c0_6 = arith.constant 0 : index
    %4 = vector.load %arg4[%c0_5, %c0_6] : memref<128x20xf32, #tpu.memory_space<vmem>>, vector<128x20xf32>
    %cst_7 = arith.constant dense<0.000000e+00> : vector<8x20xf32>
    %5 = tpu.matmul %3, %4, %cst_7 {dimension_numbers = #tpu.dot_dimension_numbers<[1], [0], [0], [1], [0, 0, 1, 1], [], []>} : vector<8x128xf32>, vector<128x20xf32>, vector<8x20xf32> -> vector<8x20xf32>
    %c0_8 = arith.constant 0 : index
    %c0_9 = arith.constant 0 : index
    %6 = vector.load %arg5[%c0_8, %c0_9] : memref<1x20xf32, #tpu.memory_space<vmem>>, vector<1x20xf32>
    %7 = vector.broadcast %6 : vector<1x20xf32> to vector<8x20xf32>
    %8 = arith.addf %2, %7 : vector<8x20xf32>
    %c0_10 = arith.constant 0 : index
    %c0_11 = arith.constant 0 : index
    %9 = vector.load %arg7[%c0_10, %c0_11] : memref<8x20xf32, #tpu.memory_space<vmem>>, vector<8x20xf32>
    tpu.vector_store %arg7[%c0_10, %c0_11], %8 {strides = array<i32>} : memref<8x20xf32, #tpu.memory_space<vmem>>, vector<8x20xf32>,
    %c0_12 = arith.constant 0 : index
    %c0_13 = arith.constant 0 : index
    %10 = vector.load %arg6[%c0_12, %c0_13] : memref<1x20xf32, #tpu.memory_space<vmem>>, vector<1x20xf32>
    %11 = vector.broadcast %10 : vector<1x20xf32> to vector<8x20xf32>
    %12 = arith.addf %5, %11 : vector<8x20xf32>
    %c0_14 = arith.constant 0 : index
    %c0_15 = arith.constant 0 : index
    %13 = vector.load %arg8[%c0_14, %c0_15] : memref<8x20xf32, #tpu.memory_space<vmem>>, vector<8x20xf32>
    tpu.vector_store %arg8[%c0_14, %c0_15], %12 {strides = array<i32>} : memref<8x20xf32, #tpu.memory_space<vmem>>, vector<8x20xf32>,
    return
  }
  func.func @transform_0(%arg0: i32) -> (i32, i32) {
    %c0_i32 = arith.constant 0 : i32
    %c0_i32_0 = arith.constant 0 : i32
    return %arg0, %c0_i32 : i32, i32
  }
  func.func @transform_1(%arg0: i32) -> (i32, i32) {
    %c0_i32 = arith.constant 0 : i32
    %c0_i32_0 = arith.constant 0 : i32
    return %arg0, %c0_i32 : i32, i32
  }
  func.func @transform_2(%arg0: i32) -> (i32, i32) {
    %c0_i32 = arith.constant 0 : i32
    %c0_i32_0 = arith.constant 0 : i32
    %c0_i32_1 = arith.constant 0 : i32
    return %c0_i32, %c0_i32_0 : i32, i32
  }
  func.func @transform_3(%arg0: i32) -> (i32, i32) {
    %c0_i32 = arith.constant 0 : i32
    %c0_i32_0 = arith.constant 0 : i32
    %c0_i32_1 = arith.constant 0 : i32
    return %c0_i32, %c0_i32_0 : i32, i32
  }
  func.func @transform_4(%arg0: i32) -> (i32, i32) {
    %c0_i32 = arith.constant 0 : i32
    %c0_i32_0 = arith.constant 0 : i32
    %c0_i32_1 = arith.constant 0 : i32
    return %c0_i32, %c0_i32_0 : i32, i32
  }
  func.func @transform_5(%arg0: i32) -> (i32, i32) {
    %c0_i32 = arith.constant 0 : i32
    %c0_i32_0 = arith.constant 0 : i32
    %c0_i32_1 = arith.constant 0 : i32
    return %c0_i32, %c0_i32_0 : i32, i32
  }
  func.func @transform_6(%arg0: i32) -> (i32, i32) {
    %c0_i32 = arith.constant 0 : i32
    %c0_i32_0 = arith.constant 0 : i32
    return %arg0, %c0_i32 : i32, i32
  }
  func.func @transform_7(%arg0: i32) -> (i32, i32) {
    %c0_i32 = arith.constant 0 : i32
    %c0_i32_0 = arith.constant 0 : i32
    return %arg0, %c0_i32 : i32, i32
  }
}

</mosaic_0001>

<llo_original>
// kernel: tpu_custom_call.1
$region0: #{tpu_custom_call.1}
  #allocation0 [shape = 'u32[]', space=smem, size = 0x4, offset = 0x4, fixed_abs, tag = 'smem constant byte address 0x4 - core index']
  #allocation1 [shape = 'u32[144,128]{1,0:T(1,128)}', space=vmem, size = 0x12000, scoped, tag = 'internal scratch']
  %s0 = inlined_call_operand.vmem [shape: f32[16,128], index: 0, kind: input, shape index: {}]
  %s1 = inlined_call_operand.vmem [shape: f32[16,128], index: 1, kind: input, shape index: {}]
  %s2 = inlined_call_operand.vmem [shape: f32[128,20], index: 2, kind: input, shape index: {}]
  %s3 = inlined_call_operand.vmem [shape: f32[128,20], index: 3, kind: input, shape index: {}]
  %s4 = inlined_call_operand.vmem [shape: f32[1,20], index: 4, kind: input, shape index: {}]
  %s5 = inlined_call_operand.vmem [shape: f32[1,20], index: 5, kind: input, shape index: {}]
  %s6 = inlined_call_operand.hbm [shape: f32[16,20], index: 6, kind: output, shape index: {0}]
  %s7 = inlined_call_operand.hbm [shape: f32[16,20], index: 7, kind: output, shape index: {1}]
  %8 = xla_tuple %s6, %s7
  %s9 = sld [smem:[#allocation0]]
  $region65: #{tpu_custom_call.1} parent=0
    _
  %s11 = ssub.s32 1, %s9
  %s12 = scalar_select 0, %s11, %s9
  $region1: #{tpu_custom_call.1} parent=0
    #allocation2 [shape = 'u8[8192]{0}', space=vmem, size = 0x2000, scoped, tag = 'output window, operand 0']
    #allocation3 [shape = 's32[2]{0}', space=sflag, size = 0x8, scoped, tag = 'scoped memory for tpu_custom_call.1']
    #allocation4 [shape = 'u8[8192]{0}', space=vmem, size = 0x2000, scoped, tag = 'output window, operand 1']
    #allocation5 [shape = 's32[2]{0}', space=sflag, size = 0x8, scoped, tag = 'scoped memory for tpu_custom_call.1']
    %13 = vsyncpa [#allocation3], 0
    %s14 = scalar_lea.sflag [#allocation3], 1
    %15 = vsyncpa %s14, 0
    %16 = vsyncpa [#allocation5], 0
    %s17 = scalar_lea.sflag [#allocation5], 1
    %18 = vsyncpa %s17, 0
    loop: start=0, step=1, limit=4
    $region2: #{tpu_custom_call.1} parent=1 // loop_pre_header
      _
    $region3: #{tpu_custom_call.1} parent=1 // loop_header
      %s20 = sphi 0, %s24
      %p21 = scmp.ge.s32.totalorder %s20, 4
      %s30 = sphi 0, %s32
      %s33 = sphi 0, %s30
      %s34 = sphi 0, %s33
      %s50 = sphi 0, %s34
      %s56 = sphi 0, %s58
      %s59 = sphi 0, %s56
      %s60 = sphi 0, %s59
      %s76 = sphi 0, %s60
      %s80 = sphi 0, %s80
      %s82 = sphi 0, %s80
      %s83 = sphi 0, %s82
      %s97 = sphi 0, %s83
      %s101 = sphi 0, %s101
      %s103 = sphi 0, %s101
      %s104 = sphi 0, %s103
      %s118 = sphi 0, %s104
      %s122 = sphi 0, %s122
      %s124 = sphi 0, %s122
      %s125 = sphi 0, %s124
      %s139 = sphi 0, %s125
      %s143 = sphi 0, %s143
      %s145 = sphi 0, %s143
      %s146 = sphi 0, %s145
      %s160 = sphi 0, %s146
      %s166 = sphi 0, %s168
      %s169 = sphi 0, %s166
      %s170 = sphi 0, %s169
      %s186 = sphi 0, %s170
      %s192 = sphi 0, %s194
      %s195 = sphi 0, %s192
      %s196 = sphi 0, %s195
      %s212 = sphi 0, %s196
    $region4: #{tpu_custom_call.1} parent=1 // loop_header_branch
      %23 = sbr.rel (%p21) target = $region8
    $region5: #{tpu_custom_call.1} parent=1 // loop_body
      %s25 = ssub.s32 %s20, 1
      %s26 = ssub.s32 %s20, 2
      %s27 = sadd.s32 %s20, 1
      %s28 = ssub.s32 %s20, %s27
      %p29 = scmp.eq.s32.totalorder %s28, 0
      %s31 = sadd.s32 %s30, 1
      %s32 = scalar_select %p29, %s30, %s31
      %p35 = pneg %p29
      %p36 = scmp.eq.s32.totalorder %s20, 1
      %p37 = por %p35, %p36
      %p38 = scmp.ne.s32.totalorder %s30, %s33
      %p39 = scmp.eq.s32.totalorder %s20, 0
      %p40 = por %p38, %p39
      %p41 = scmp.ne.s32.totalorder %s30, %s33
      %p42 = scmp.eq.s32.totalorder %s25, 1
      %p43 = por %p41, %p42
      %p44 = scmp.ne.s32.totalorder %s33, %s34
      %p45 = scmp.eq.s32.totalorder %s25, 0
      %p46 = por %p44, %p45
      %p47 = scmp.ne.s32.totalorder %s33, %s34
      %p48 = scmp.eq.s32.totalorder %s26, 1
      %p49 = por %p47, %p48
      %p51 = scmp.ne.s32.totalorder %s34, %s50
      %p52 = scmp.eq.s32.totalorder %s26, 0
      %p53 = por %p51, %p52
      %s54 = ssub.s32 %s20, %s27
      %p55 = scmp.eq.s32.totalorder %s54, 0
      %s57 = sadd.s32 %s56, 1
      %s58 = scalar_select %p55, %s56, %s57
      %p61 = pneg %p55
      %p62 = scmp.eq.s32.totalorder %s20, 1
      %p63 = por %p61, %p62
      %p64 = scmp.ne.s32.totalorder %s56, %s59
      %p65 = scmp.eq.s32.totalorder %s20, 0
      %p66 = por %p64, %p65
      %p67 = scmp.ne.s32.totalorder %s56, %s59
      %p68 = scmp.eq.s32.totalorder %s25, 1
      %p69 = por %p67, %p68
      %p70 = scmp.ne.s32.totalorder %s59, %s60
      %p71 = scmp.eq.s32.totalorder %s25, 0
      %p72 = por %p70, %p71
      %p73 = scmp.ne.s32.totalorder %s59, %s60
      %p74 = scmp.eq.s32.totalorder %s26, 1
      %p75 = por %p73, %p74
      %p77 = scmp.ne.s32.totalorder %s60, %s76
      %p78 = scmp.eq.s32.totalorder %s26, 0
      %p79 = por %p77, %p78
      %s81 = sadd.s32 %s80, 1
      %p84 = scmp.eq.s32.totalorder %s20, 1
      %p85 = scmp.ne.s32.totalorder %s80, %s82
      %p86 = scmp.eq.s32.totalorder %s20, 0
      %p87 = por %p85, %p86
      %p88 = scmp.ne.s32.totalorder %s80, %s82
      %p89 = scmp.eq.s32.totalorder %s25, 1
      %p90 = por %p88, %p89
      %p91 = scmp.ne.s32.totalorder %s82, %s83
      %p92 = scmp.eq.s32.totalorder %s25, 0
      %p93 = por %p91, %p92
      %p94 = scmp.ne.s32.totalorder %s82, %s83
      %p95 = scmp.eq.s32.totalorder %s26, 1
      %p96 = por %p94, %p95
      %p98 = scmp.ne.s32.totalorder %s83, %s97
      %p99 = scmp.eq.s32.totalorder %s26, 0
      %p100 = por %p98, %p99
      %s102 = sadd.s32 %s101, 1
      %p105 = scmp.eq.s32.totalorder %s20, 1
      %p106 = scmp.ne.s32.totalorder %s101, %s103
      %p107 = scmp.eq.s32.totalorder %s20, 0
      %p108 = por %p106, %p107
      %p109 = scmp.ne.s32.totalorder %s101, %s103
      %p110 = scmp.eq.s32.totalorder %s25, 1
      %p111 = por %p109, %p110
      %p112 = scmp.ne.s32.totalorder %s103, %s104
      %p113 = scmp.eq.s32.totalorder %s25, 0
      %p114 = por %p112, %p113
      %p115 = scmp.ne.s32.totalorder %s103, %s104
      %p116 = scmp.eq.s32.totalorder %s26, 1
      %p117 = por %p115, %p116
      %p119 = scmp.ne.s32.totalorder %s104, %s118
      %p120 = scmp.eq.s32.totalorder %s26, 0
      %p121 = por %p119, %p120
      %s123 = sadd.s32 %s122, 1
      %p126 = scmp.eq.s32.totalorder %s20, 1
      %p127 = scmp.ne.s32.totalorder %s122, %s124
      %p128 = scmp.eq.s32.totalorder %s20, 0
      %p129 = por %p127, %p128
      %p130 = scmp.ne.s32.totalorder %s122, %s124
      %p131 = scmp.eq.s32.totalorder %s25, 1
      %p132 = por %p130, %p131
      %p133 = scmp.ne.s32.totalorder %s124, %s125
      %p134 = scmp.eq.s32.totalorder %s25, 0
      %p135 = por %p133, %p134
      %p136 = scmp.ne.s32.totalorder %s124, %s125
      %p137 = scmp.eq.s32.totalorder %s26, 1
      %p138 = por %p136, %p137
      %p140 = scmp.ne.s32.totalorder %s125, %s139
      %p141 = scmp.eq.s32.totalorder %s26, 0
      %p142 = por %p140, %p141
      %s144 = sadd.s32 %s143, 1
      %p147 = scmp.eq.s32.totalorder %s20, 1
      %p148 = scmp.ne.s32.totalorder %s143, %s145
      %p149 = scmp.eq.s32.totalorder %s20, 0
      %p150 = por %p148, %p149
      %p151 = scmp.ne.s32.totalorder %s143, %s145
      %p152 = scmp.eq.s32.totalorder %s25, 1
      %p153 = por %p151, %p152
      %p154 = scmp.ne.s32.totalorder %s145, %s146
      %p155 = scmp.eq.s32.totalorder %s25, 0
      %p156 = por %p154, %p155
      %p157 = scmp.ne.s32.totalorder %s145, %s146
      %p158 = scmp.eq.s32.totalorder %s26, 1
      %p159 = por %p157, %p158
      %p161 = scmp.ne.s32.totalorder %s146, %s160
      %p162 = scmp.eq.s32.totalorder %s26, 0
      %p163 = por %p161, %p162
      %s164 = ssub.s32 %s20, %s27
      %p165 = scmp.eq.s32.totalorder %s164, 0
      %s167 = sadd.s32 %s166, 1
      %s168 = scalar_select %p165, %s166, %s167
      %p171 = pneg %p165
      %p172 = scmp.eq.s32.totalorder %s20, 1
      %p173 = por %p171, %p172
      %p174 = scmp.ne.s32.totalorder %s166, %s169
      %p175 = scmp.eq.s32.totalorder %s20, 0
      %p176 = por %p174, %p175
      %p177 = scmp.ne.s32.totalorder %s166, %s169
      %p178 = scmp.eq.s32.totalorder %s25, 1
      %p179 = por %p177, %p178
      %p180 = scmp.ne.s32.totalorder %s169, %s170
      %p181 = scmp.eq.s32.totalorder %s25, 0
      %p182 = por %p180, %p181
      %p183 = scmp.ne.s32.totalorder %s169, %s170
      %p184 = scmp.eq.s32.totalorder %s26, 1
      %p185 = por %p183, %p184
      %p187 = scmp.ne.s32.totalorder %s170, %s186
      %p188 = scmp.eq.s32.totalorder %s26, 0
      %p189 = por %p187, %p188
      %s190 = ssub.s32 %s20, %s27
      %p191 = scmp.eq.s32.totalorder %s190, 0
      %s193 = sadd.s32 %s192, 1
      %s194 = scalar_select %p191, %s192, %s193
      %p197 = pneg %p191
      %p198 = scmp.eq.s32.totalorder %s20, 1
      %p199 = por %p197, %p198
      %p200 = scmp.ne.s32.totalorder %s192, %s195
      %p201 = scmp.eq.s32.totalorder %s20, 0
      %p202 = por %p200, %p201
      %p203 = scmp.ne.s32.totalorder %s192, %s195
      %p204 = scmp.eq.s32.totalorder %s25, 1
      %p205 = por %p203, %p204
      %p206 = scmp.ne.s32.totalorder %s195, %s196
      %p207 = scmp.eq.s32.totalorder %s25, 0
      %p208 = por %p206, %p207
      %p209 = scmp.ne.s32.totalorder %s195, %s196
      %p210 = scmp.eq.s32.totalorder %s26, 1
      %p211 = por %p209, %p210
      %p213 = scmp.ne.s32.totalorder %s196, %s212
      %p214 = scmp.eq.s32.totalorder %s26, 0
      %p215 = por %p213, %p214
      %p216 = scmp.le.s32.totalorder 1, %s20
      %p217 = scmp.lt.s32.totalorder %s20, 3
      %p218 = pnand %p216, %p217
      %p219 = pneg %p218
      // Predicated region
      $region9: #{tpu_custom_call.1} parent=5 // pred_check
        _
      $region10: #{tpu_custom_call.1} parent=5 // pred_check_branch
        %221 = sbr.rel (%p218) target = $region12
      $region11: #{tpu_custom_call.1} parent=5 // pred_region
        %s222 = ssub.s32 %s20, 1
        // Predicated region
        $region13: #{tpu_custom_call.1} parent=11 // pred_check
          %p223 = pneg %p93
        $region14: #{tpu_custom_call.1} parent=11 // pred_check_branch
          %225 = sbr.rel (%p223) target = $region16
        $region15: #{tpu_custom_call.1} parent=11 // pred_region
          _
        $region16: #{tpu_custom_call.1} parent=11 // pred_fallthru
          _
        // Predicated region
        $region17: #{tpu_custom_call.1} parent=11 // pred_check
          %p226 = pneg %p114
        $region18: #{tpu_custom_call.1} parent=11 // pred_check_branch
          %228 = sbr.rel (%p226) target = $region20
        $region19: #{tpu_custom_call.1} parent=11 // pred_region
          _
        $region20: #{tpu_custom_call.1} parent=11 // pred_fallthru
          _
        // Predicated region
        $region21: #{tpu_custom_call.1} parent=11 // pred_check
          %p229 = pneg %p135
        $region22: #{tpu_custom_call.1} parent=11 // pred_check_branch
          %231 = sbr.rel (%p229) target = $region24
        $region23: #{tpu_custom_call.1} parent=11 // pred_region
          _
        $region24: #{tpu_custom_call.1} parent=11 // pred_fallthru
          _
        // Predicated region
        $region25: #{tpu_custom_call.1} parent=11 // pred_check
          %p232 = pneg %p156
        $region26: #{tpu_custom_call.1} parent=11 // pred_check_branch
          %234 = sbr.rel (%p232) target = $region28
        $region27: #{tpu_custom_call.1} parent=11 // pred_region
          _
        $region28: #{tpu_custom_call.1} parent=11 // pred_fallthru
          _
      $region12: #{tpu_custom_call.1} parent=5 // pred_fallthru
        _
      %p235 = scmp.lt.s32.totalorder %s20, 2
      // Predicated region
      $region29: #{tpu_custom_call.1} parent=5 // pred_check
        %p236 = pneg %p235
      $region30: #{tpu_custom_call.1} parent=5 // pred_check_branch
        %238 = sbr.rel (%p236) target = $region32
      $region31: #{tpu_custom_call.1} parent=5 // pred_region
        // Predicated region
        $region33: #{tpu_custom_call.1} parent=31 // pred_check
          %p239 = pneg %p40
        $region34: #{tpu_custom_call.1} parent=31 // pred_check_branch
          %241 = sbr.rel (%p239) target = $region36
        $region35: #{tpu_custom_call.1} parent=31 // pred_region
          %p242 = scmp.lt.s32.totalorder %s20, 1
          %s243 = scalar_select %p242, %s20, 1
          %s244 = smul.addr %s243, 8
          %s245 = scalar_lea.vmem %s0, %s244
        $region36: #{tpu_custom_call.1} parent=31 // pred_fallthru
          _
        // Predicated region
        $region37: #{tpu_custom_call.1} parent=31 // pred_check
          %p246 = pneg %p66
        $region38: #{tpu_custom_call.1} parent=31 // pred_check_branch
          %248 = sbr.rel (%p246) target = $region40
        $region39: #{tpu_custom_call.1} parent=31 // pred_region
          %p249 = scmp.lt.s32.totalorder %s20, 1
          %s250 = scalar_select %p249, %s20, 1
          %s251 = smul.addr %s250, 8
          %s252 = scalar_lea.vmem %s1, %s251
        $region40: #{tpu_custom_call.1} parent=31 // pred_fallthru
          _
      $region32: #{tpu_custom_call.1} parent=5 // pred_fallthru
        _
      %p253 = scmp.le.s32.totalorder 1, %s20
      %p254 = scmp.lt.s32.totalorder %s20, 3
      %p255 = pnand %p253, %p254
      %p256 = pneg %p255
      // Predicated region
      $region41: #{tpu_custom_call.1} parent=5 // pred_check
        _
      $region42: #{tpu_custom_call.1} parent=5 // pred_check_branch
        %258 = sbr.rel (%p255) target = $region44
      $region43: #{tpu_custom_call.1} parent=5 // pred_region
        %s259 = ssub.s32 %s20, 1
        %p260 = scmp.lt.s32.totalorder %s25, 1
        %s261 = scalar_select %p260, %s25, 1
        %s262 = smul.addr %s261, 8
        %s263 = scalar_lea.vmem %s0, %s262
        %p264 = pneg %p46
        %p265 = pneg %p43
        %p266 = scmp.lt.s32.totalorder %s25, 1
        %s267 = scalar_select %p266, %s25, 1
        %s268 = smul.addr %s267, 8
        %s269 = scalar_lea.vmem %s1, %s268
        %p270 = pneg %p72
        %p271 = pneg %p69
        %p272 = pneg %p93
        %p273 = pneg %p90
        %p274 = pneg %p114
        %p275 = pneg %p111
        %p276 = pneg %p135
        %p277 = pneg %p132
        %p278 = pneg %p156
        %p279 = pneg %p153
        %p280 = pneg %p182
        %p281 = pneg %p179
        %s282 = sand.u32 %s169, 1
        %s283 = scalar_lea.sflag [#allocation3], %s282
        %s284 = sand.u32 %s169, 1
        %s285 = smul.addr %s284, 8
        %s286 = scalar_lea.vmem [#allocation2], %s285
        %p287 = pneg %p208
        %p288 = pneg %p205
        %s289 = sand.u32 %s195, 1
        %s290 = scalar_lea.sflag [#allocation5], %s289
        %s291 = sand.u32 %s195, 1
        %s292 = smul.addr %s291, 8
        %s293 = scalar_lea.vmem [#allocation4], %s292
        %p294 = scmp.lt.s32.totalorder %s25, 1
        %s295 = scalar_select %p294, %s25, 1
        %s296 = smul.addr %s295, 8
        %s297 = scalar_lea.vmem %s0, %s296
        %p298 = scmp.lt.s32.totalorder %s25, 1
        %s299 = scalar_select %p298, %s25, 1
        %s300 = smul.addr %s299, 8
        %s301 = scalar_lea.vmem %s1, %s300
        %v302 = vld [vmem:[%s297] sm:$0xff]
        %v303 = vld [vmem:[%s2] sm:$0xff]
        %v304 = vld [vmem:[%s2 + $0x8] sm:$0xff]
        %v305 = vld [vmem:[%s2 + $0x10] sm:$0xff]
        %v306 = vld [vmem:[%s2 + $0x18] sm:$0xff]
        %v307 = vld [vmem:[%s2 + $0x20] sm:$0xff]
        %v308 = vld [vmem:[%s2 + $0x28] sm:$0xff]
        %v309 = vld [vmem:[%s2 + $0x30] sm:$0xff]
        %v310 = vld [vmem:[%s2 + $0x38] sm:$0xff]
        %v311 = vld [vmem:[%s2 + $0x40] sm:$0xff]
        %v312 = vld [vmem:[%s2 + $0x48] sm:$0xff]
        %v313 = vld [vmem:[%s2 + $0x50] sm:$0xff]
        %v314 = vld [vmem:[%s2 + $0x58] sm:$0xff]
        %v315 = vld [vmem:[%s2 + $0x60] sm:$0xff]
        %v316 = vld [vmem:[%s2 + $0x68] sm:$0xff]
        %v317 = vld [vmem:[%s2 + $0x70] sm:$0xff]
        %v318 = vld [vmem:[%s2 + $0x78] sm:$0xff]
        %v319 = vld [vmem:[%s301] sm:$0xff]
        %v320 = vld [vmem:[%s3] sm:$0xff]
        %v321 = vld [vmem:[%s3 + $0x8] sm:$0xff]
        %v322 = vld [vmem:[%s3 + $0x10] sm:$0xff]
        %v323 = vld [vmem:[%s3 + $0x18] sm:$0xff]
        %v324 = vld [vmem:[%s3 + $0x20] sm:$0xff]
        %v325 = vld [vmem:[%s3 + $0x28] sm:$0xff]
        %v326 = vld [vmem:[%s3 + $0x30] sm:$0xff]
        %v327 = vld [vmem:[%s3 + $0x38] sm:$0xff]
        %v328 = vld [vmem:[%s3 + $0x40] sm:$0xff]
        %v329 = vld [vmem:[%s3 + $0x48] sm:$0xff]
        %v330 = vld [vmem:[%s3 + $0x50] sm:$0xff]
        %v331 = vld [vmem:[%s3 + $0x58] sm:$0xff]
        %v332 = vld [vmem:[%s3 + $0x60] sm:$0xff]
        %v333 = vld [vmem:[%s3 + $0x68] sm:$0xff]
        %v334 = vld [vmem:[%s3 + $0x70] sm:$0xff]
        %v335 = vld [vmem:[%s3 + $0x78] sm:$0xff]
        %v336 = vld [vmem:[%s4] sm:$0x1]
        %v338 = vlaneseq
        %v339 = vshrl.u32 %v338, 7
        %v340 = vsub.s32 0, %v339
        %v341 = vrot.slane %v336, %v340
        %343 = vmatprep.subr.mxu0 0.0
        %344 = vmatpush1.msra.mxu0 %v318
        %345 = vmatprep.subr.mxu0 0.0
        %346 = vmatpush1.msra.mxu0 %v317
        %347 = vmatprep.subr.mxu0 0.0
        %348 = vmatpush1.msra.mxu0 %v316
        %349 = vmatprep.subr.mxu0 0.0
        %350 = vmatpush1.msra.mxu0 %v315
        %351 = vmatprep.subr.mxu0 0.0
        %352 = vmatpush1.msra.mxu0 %v314
        %353 = vmatprep.subr.mxu0 0.0
        %354 = vmatpush1.msra.mxu0 %v313
        %355 = vmatprep.subr.mxu0 0.0
        %356 = vmatpush1.msra.mxu0 %v312
        %357 = vmatprep.subr.mxu0 0.0
        %358 = vmatpush1.msra.mxu0 %v311
        %359 = vmatprep.subr.mxu0 0.0
        %360 = vmatpush1.msra.mxu0 %v310
        %361 = vmatprep.subr.mxu0 0.0
        %362 = vmatpush1.msra.mxu0 %v309
        %363 = vmatprep.subr.mxu0 0.0
        %364 = vmatpush1.msra.mxu0 %v308
        %365 = vmatprep.subr.mxu0 0.0
        %366 = vmatpush1.msra.mxu0 %v307
        %367 = vmatprep.subr.mxu0 0.0
        %368 = vmatpush1.msra.mxu0 %v306
        %369 = vmatprep.subr.mxu0 0.0
        %370 = vmatpush1.msra.mxu0 %v305
        %371 = vmatprep.subr.mxu0 0.0
        %372 = vmatpush1.msra.mxu0 %v304
        %373 = vmatprep.subr.mxu0 0.0
        %374 = vmatpush1.msra.mxu0 %v303
        %375 = vmatprep.subr.mxu0 0.0
        %376 = vmatpush2.msra.mxu0 0.0
        %377 = vmatprep.subr.mxu0 0.0
        %378 = vmatpush2.msra.mxu0 0.0
        %379 = vmatprep.subr.mxu0 0.0
        %380 = vmatpush2.msra.mxu0 0.0
        %381 = vmatprep.subr.mxu0 0.0
        %382 = vmatpush2.msra.mxu0 0.0
        %383 = vmatprep.subr.mxu0 0.0
        %384 = vmatpush2.msra.mxu0 0.0
        %385 = vmatprep.subr.mxu0 0.0
        %386 = vmatpush2.msra.mxu0 0.0
        %387 = vmatprep.subr.mxu0 0.0
        %388 = vmatpush2.msra.mxu0 0.0
        %389 = vmatprep.subr.mxu0 0.0
        %390 = vmatpush2.msra.mxu0 0.0
        %391 = vmatprep.subr.mxu0 0.0
        %392 = vmatpush2.msra.mxu0 0.0
        %393 = vmatprep.subr.mxu0 0.0
        %394 = vmatpush2.msra.mxu0 0.0
        %395 = vmatprep.subr.mxu0 0.0
        %396 = vmatpush2.msra.mxu0 0.0
        %397 = vmatprep.subr.mxu0 0.0
        %398 = vmatpush2.msra.mxu0 0.0
        %399 = vmatprep.subr.mxu0 0.0
        %400 = vmatpush2.msra.mxu0 0.0
        %401 = vmatprep.subr.mxu0 0.0
        %402 = vmatpush2.msra.mxu0 0.0
        %403 = vmatprep.subr.mxu0 0.0
        %404 = vmatpush2.msra.mxu0 0.0
        %405 = vmatprep.subr.mxu0 0.0
        %406 = vmatpush2.msra.mxu0 0.0
        %407 = vmatprep.mubr.f32.mxu0 0.0
        %408 = vmatmul.mubr.f32.gmra.mxu0 %v302
        %v409 = vpop.f32.mrf.mxu0
        %v410 = vadd.f32 %v341, %v409
        %v411 = vpop.f32.mrf.mxu0
        %412 = vdwg.mxu0
        %vm413 = vcmask 162816
        %414 = vst.msk [vmem:[%s286] sm:$0xff] %vm413, %v410
        %v415 = vld [vmem:[%s5] sm:$0x1]
        %v417 = vlaneseq
        %v418 = vshrl.u32 %v417, 7
        %v419 = vsub.s32 0, %v418
        %v420 = vrot.slane %v415, %v419
        %422 = vmatprep.subr.mxu0 0.0
        %423 = vmatpush1.msra.mxu0 %v335
        %424 = vmatprep.subr.mxu0 0.0
        %425 = vmatpush1.msra.mxu0 %v334
        %426 = vmatprep.subr.mxu0 0.0
        %427 = vmatpush1.msra.mxu0 %v333
        %428 = vmatprep.subr.mxu0 0.0
        %429 = vmatpush1.msra.mxu0 %v332
        %430 = vmatprep.subr.mxu0 0.0
        %431 = vmatpush1.msra.mxu0 %v331
        %432 = vmatprep.subr.mxu0 0.0
        %433 = vmatpush1.msra.mxu0 %v330
        %434 = vmatprep.subr.mxu0 0.0
        %435 = vmatpush1.msra.mxu0 %v329
        %436 = vmatprep.subr.mxu0 0.0
        %437 = vmatpush1.msra.mxu0 %v328
        %438 = vmatprep.subr.mxu0 0.0
        %439 = vmatpush1.msra.mxu0 %v327
        %440 = vmatprep.subr.mxu0 0.0
        %441 = vmatpush1.msra.mxu0 %v326
        %442 = vmatprep.subr.mxu0 0.0
        %443 = vmatpush1.msra.mxu0 %v325
        %444 = vmatprep.subr.mxu0 0.0
        %445 = vmatpush1.msra.mxu0 %v324
        %446 = vmatprep.subr.mxu0 0.0
        %447 = vmatpush1.msra.mxu0 %v323
        %448 = vmatprep.subr.mxu0 0.0
        %449 = vmatpush1.msra.mxu0 %v322
        %450 = vmatprep.subr.mxu0 0.0
        %451 = vmatpush1.msra.mxu0 %v321
        %452 = vmatprep.subr.mxu0 0.0
        %453 = vmatpush1.msra.mxu0 %v320
        %454 = vmatprep.subr.mxu0 0.0
        %455 = vmatpush2.msra.mxu0 0.0
        %456 = vmatprep.subr.mxu0 0.0
        %457 = vmatpush2.msra.mxu0 0.0
        %458 = vmatprep.subr.mxu0 0.0
        %459 = vmatpush2.msra.mxu0 0.0
        %460 = vmatprep.subr.mxu0 0.0
        %461 = vmatpush2.msra.mxu0 0.0
        %462 = vmatprep.subr.mxu0 0.0
        %463 = vmatpush2.msra.mxu0 0.0
        %464 = vmatprep.subr.mxu0 0.0
        %465 = vmatpush2.msra.mxu0 0.0
        %466 = vmatprep.subr.mxu0 0.0
        %467 = vmatpush2.msra.mxu0 0.0
        %468 = vmatprep.subr.mxu0 0.0
        %469 = vmatpush2.msra.mxu0 0.0
        %470 = vmatprep.subr.mxu0 0.0
        %471 = vmatpush2.msra.mxu0 0.0
        %472 = vmatprep.subr.mxu0 0.0
        %473 = vmatpush2.msra.mxu0 0.0
        %474 = vmatprep.subr.mxu0 0.0
        %475 = vmatpush2.msra.mxu0 0.0
        %476 = vmatprep.subr.mxu0 0.0
        %477 = vmatpush2.msra.mxu0 0.0
        %478 = vmatprep.subr.mxu0 0.0
        %479 = vmatpush2.msra.mxu0 0.0
        %480 = vmatprep.subr.mxu0 0.0
        %481 = vmatpush2.msra.mxu0 0.0
        %482 = vmatprep.subr.mxu0 0.0
        %483 = vmatpush2.msra.mxu0 0.0
        %484 = vmatprep.subr.mxu0 0.0
        %485 = vmatpush2.msra.mxu0 0.0
        %486 = vmatprep.mubr.f32.mxu0 0.0
        %487 = vmatmul.mubr.f32.gmra.mxu0 %v319
        %v488 = vpop.f32.mrf.mxu0
        %v489 = vadd.f32 %v420, %v488
        %v490 = vpop.f32.mrf.mxu0
        %491 = vdwg.mxu0
        %492 = vst.msk [vmem:[%s293] sm:$0xff] %vm413, %v489
        %s493 = sand.u32 %s169, 1
        %s494 = scalar_lea.sflag [#allocation3], %s493
        %s495 = sand.u32 %s169, 1
        %s496 = smul.addr %s495, 8
        %s497 = scalar_lea.vmem [#allocation2], %s496
        %s498 = sand.u32 %s195, 1
        %s499 = scalar_lea.sflag [#allocation5], %s498
        %s500 = sand.u32 %s195, 1
        %s501 = smul.addr %s500, 8
        %s502 = scalar_lea.vmem [#allocation4], %s501
        // Predicated region
        $region45: #{tpu_custom_call.1} parent=43 // pred_check
          %p503 = pneg %p179
        $region46: #{tpu_custom_call.1} parent=43 // pred_check_branch
          %505 = sbr.rel (%p503) target = $region48
        $region47: #{tpu_custom_call.1} parent=43 // pred_region
          %s507 = ssub.s32 128, 128
          %508 = vsyncadd %s494, %s507
          %s509 = smul.addr %s25, 128
          %s510 = scalar_lea.hbm %s6, %s509
          %s512 = sshll.u32 %s497, 4
          %s513 = int_to_ptr.vmem [resolvable:$true] %s512
          %515 = dma.vmem_to_hbm [thread:$0]  %s513, 128, %s510, %s494
        $region48: #{tpu_custom_call.1} parent=43 // pred_fallthru
          _
        // Predicated region
        $region49: #{tpu_custom_call.1} parent=43 // pred_check
          %p516 = pneg %p205
        $region50: #{tpu_custom_call.1} parent=43 // pred_check_branch
          %518 = sbr.rel (%p516) target = $region52
        $region51: #{tpu_custom_call.1} parent=43 // pred_region
          %s520 = ssub.s32 128, 128
          %521 = vsyncadd %s499, %s520
          %s522 = smul.addr %s25, 128
          %s523 = scalar_lea.hbm %s7, %s522
          %s525 = sshll.u32 %s502, 4
          %s526 = int_to_ptr.vmem [resolvable:$true] %s525
          %528 = dma.vmem_to_hbm [thread:$0]  %s526, 128, %s523, %s499
        $region52: #{tpu_custom_call.1} parent=43 // pred_fallthru
          _
      $region44: #{tpu_custom_call.1} parent=5 // pred_fallthru
        _
      %p529 = scmp.le.s32.totalorder 2, %s20
      // Predicated region
      $region53: #{tpu_custom_call.1} parent=5 // pred_check
        %p530 = pneg %p529
      $region54: #{tpu_custom_call.1} parent=5 // pred_check_branch
        %532 = sbr.rel (%p530) target = $region56
      $region55: #{tpu_custom_call.1} parent=5 // pred_region
        %s533 = ssub.s32 %s20, 2
        // Predicated region
        $region57: #{tpu_custom_call.1} parent=55 // pred_check
          %p534 = pneg %p185
        $region58: #{tpu_custom_call.1} parent=55 // pred_check_branch
          %536 = sbr.rel (%p534) target = $region60
        $region59: #{tpu_custom_call.1} parent=55 // pred_region
          %s537 = sand.u32 %s170, 1
          %s538 = scalar_lea.sflag [#allocation3], %s537
          %s539 = sand.u32 %s170, 1
          %s540 = smul.addr %s539, 8
          %s541 = scalar_lea.vmem [#allocation2], %s540
          %542 = dma.done %s538, 128
        $region60: #{tpu_custom_call.1} parent=55 // pred_fallthru
          _
        // Predicated region
        $region61: #{tpu_custom_call.1} parent=55 // pred_check
          %p543 = pneg %p211
        $region62: #{tpu_custom_call.1} parent=55 // pred_check_branch
          %545 = sbr.rel (%p543) target = $region64
        $region63: #{tpu_custom_call.1} parent=55 // pred_region
          %s546 = sand.u32 %s196, 1
          %s547 = scalar_lea.sflag [#allocation5], %s546
          %s548 = sand.u32 %s196, 1
          %s549 = smul.addr %s548, 8
          %s550 = scalar_lea.vmem [#allocation4], %s549
          %551 = dma.done %s547, 128
        $region64: #{tpu_custom_call.1} parent=55 // pred_fallthru
          _
      $region56: #{tpu_custom_call.1} parent=5 // pred_fallthru
        _
    $region6: #{tpu_custom_call.1} parent=1 // loop_footer
      %s24 = sadd.s32 1, %s20
    $region7: #{tpu_custom_call.1} parent=1 // loop_footer_branch
      %19 = sbr.rel target = $region3
    $region8: #{tpu_custom_call.1} parent=1 // loop_exit
      _
    %552 = vsyncpa [#allocation3], 1
    %s553 = scalar_lea.sflag [#allocation3], 1
    %554 = vsyncpa %s553, 1
    %555 = vsyncpa [#allocation5], 1
    %s556 = scalar_lea.sflag [#allocation5], 1
    %557 = vsyncpa %s556, 1

</llo_original>
